<compile_context>
chip_gen: v5e
topology: v5e:2x2
jax: 0.10.0
libtpu: 0.0.40
codegen_flags: <defaults>
</compile_context>

<pallas_src>
import functools

import jax
import jax.numpy as jnp
from jax import lax
from jax.experimental import pallas as pl
from jax.experimental.pallas import tpu as pltpu

LANE = 128
BATCH_ALIGN = 16   # sublane alignment safe for bf16 activations/outputs
N_TC = 2           # TensorCores per chip on v7x (1 on v5e/v6e; harmless there)


def _round_up(x, m):
    return (x + m - 1) // m * m


def dqn_kernel(x_ref, w1_ref, b1_ref, w2_ref, b2_ref, w3_ref, b3_ref, lo_ref,
               out_ref, psum_ref, *, block_b, n_valid_batch):
    """One batch tile: fc1 -> relu -> fc2 -> relu -> fc3 -> softmax -> clamp.

    Padded logit columns carry -1e30 via b3 (exp underflows to exactly 0) and a
    per-column clamp lower bound keeps them at exactly 0 in the stored output.
    The global renorm (probs /= probs.sum() over the WHOLE batch, as in the
    PyTorch module) is finished in the wrapper using the per-tile partial sums
    emitted in psum_ref.
    """
    x = x_ref[...]  # bf16, cast in the wrapper

    h1 = jnp.dot(x, w1_ref[...], preferred_element_type=jnp.float32) + b1_ref[...]
    h1 = jnp.maximum(h1, 0.0)

    h2 = jnp.dot(h1.astype(jnp.bfloat16), w2_ref[...],
                 preferred_element_type=jnp.float32) + b2_ref[...]
    h2 = jnp.maximum(h2, 0.0)

    logits = jnp.dot(h2.astype(jnp.bfloat16), w3_ref[...],
                     preferred_element_type=jnp.float32) + b3_ref[...]

    # Row softmax; reciprocal-multiply (EUP slot) instead of a VALU divide.
    m = jnp.max(logits, axis=1, keepdims=True)
    e = jnp.exp(logits - m)                      # padded cols -> exactly 0
    inv_row = pl.reciprocal(jnp.sum(e, axis=1, keepdims=True), approx=True)
    probs = e * inv_row

    # clamp(0.001, 1.0) on valid columns; padded columns stay exactly 0 because
    # their lower bound in lo_ref is 0 and their pre-clamp value is 0.
    probs = jnp.minimum(jnp.maximum(probs, lo_ref[...]), 1.0)

    probs_bf = probs.astype(jnp.bfloat16)
    out_ref[...] = probs_bf

    # Per-tile partial sum of the *stored* values over valid batch rows only
    # (padded columns contribute exactly 0, so no column mask is needed).
    row = lax.broadcasted_iota(jnp.int32, probs.shape, 0) + pl.program_id(0) * block_b
    contrib = jnp.where(row < n_valid_batch, probs_bf.astype(jnp.float32), 0.0)
    psum_ref[...] = jnp.broadcast_to(jnp.sum(contrib), psum_ref.shape)


def prepare_params(params):
    """Pad + cast the parameters ONCE (call outside the jitted forward).

    Returns (prepared_tuple, n_outputs).  Weights are bf16 MXU operands
    (W as (in, out)), biases stay f32.  Padded b3 columns hold -1e30 so the
    padded logit lanes vanish in the softmax, and `lo` is the per-column clamp
    lower bound (0.001 on valid output columns, 0.0 on padded ones).
    """
    w1, b1, w2, b2, w3, b3 = params
    n_in, n_hidden = w1.shape
    n_out = w3.shape[1]
    n_hid_p = _round_up(n_hidden, LANE)
    n_out_p = _round_up(n_out, LANE)

    def pad2(a, rows, cols, dtype):
        a = jnp.asarray(a, dtype)
        return jnp.pad(a, ((0, rows - a.shape[0]), (0, cols - a.shape[1])))

    w1p = pad2(w1, n_in, n_hid_p, jnp.bfloat16)
    b1p = pad2(b1, 1, n_hid_p, jnp.float32)
    w2p = pad2(w2, n_hid_p, n_hid_p, jnp.bfloat16)
    b2p = pad2(b2, 1, n_hid_p, jnp.float32)
    w3p = pad2(w3, n_hid_p, n_out_p, jnp.bfloat16)
    b3p = jnp.full((1, n_out_p), -1e30, jnp.float32)
    b3p = b3p.at[:, :n_out].set(jnp.asarray(b3, jnp.float32).reshape(1, n_out))
    lo = jnp.zeros((1, n_out_p), jnp.float32).at[:, :n_out].set(0.001)

    return (w1p, b1p, w2p, b2p, w3p, b3p, lo), n_out


def dqn_forward(x, prepared, *, n_outputs, batch_tile=1024):
    """x: (B, n_inputs) f32.  prepared: output of prepare_params()."""
    w1p, b1p, w2p, b2p, w3p, b3p, lo = prepared
    B, n_in = x.shape
    n_hid_p = w1p.shape[1]
    n_out_p = w3p.shape[1]

    # Batch tiling: align to 16 (bf16 sublane packing).  For large batches cap
    # the tile so the grid has at least 2*N_TC steps (both v7x TCs get work);
    # for tiny batches this degenerates to a single step.
    bp0 = _round_up(B, BATCH_ALIGN)
    tb = min(batch_tile, _round_up(-(-bp0 // (2 * N_TC)), BATCH_ALIGN))
    tb = max(tb, BATCH_ALIGN)
    bp = _round_up(bp0, tb)
    grid_b = bp // tb

    xp = jnp.pad(x.astype(jnp.bfloat16), ((0, bp - B), (0, 0)))

    def resident(shape):
        # Constant index_map -> DMA'd once, VMEM-resident across the batch grid.
        return pl.BlockSpec(shape, lambda i: (0, 0))

    flops = 2 * bp * (n_in * n_hid_p + n_hid_p * n_hid_p + n_hid_p * n_out_p)
    bytes_accessed = (xp.size * 2
                      + (w1p.size + w2p.size + w3p.size) * 2
                      + (b1p.size + b2p.size + b3p.size + lo.size) * 4
                      + bp * n_out_p * 2            # bf16 probs writeback
                      + grid_b * 8 * LANE * 4)      # partial-sum blocks
    cost = pl.CostEstimate(flops=flops,
                           transcendentals=bp * n_out_p,
                           bytes_accessed=bytes_accessed)

    kernel = functools.partial(dqn_kernel, block_b=tb, n_valid_batch=B)

    out_p, psums = pl.pallas_call(
        kernel,
        out_shape=(
            jax.ShapeDtypeStruct((bp, n_out_p), jnp.bfloat16),
            jax.ShapeDtypeStruct((grid_b, 8, LANE), jnp.float32),
        ),
        grid=(grid_b,),
        in_specs=[
            pl.BlockSpec((tb, n_in), lambda i: (i, 0)),   # activations, tiled
            resident((n_in, n_hid_p)),
            resident((1, n_hid_p)),
            resident((n_hid_p, n_hid_p)),
            resident((1, n_hid_p)),
            resident((n_hid_p, n_out_p)),
            resident((1, n_out_p)),
            resident((1, n_out_p)),                       # clamp lower bounds
        ],
        out_specs=(
            pl.BlockSpec((tb, n_out_p), lambda i: (i, 0)),
            pl.BlockSpec((1, 8, LANE), lambda i: (i, 0, 0)),
        ),
        compiler_params=pltpu.CompilerParams(
            dimension_semantics=("parallel",),
            vmem_limit_bytes=32 * 1024 * 1024,
        ),
        cost_estimate=cost,
    )(xp, w1p, b1p, w2p, b2p, w3p, b3p, lo)

    # Global renorm over the WHOLE (batch, outputs) tensor, matching PyTorch
    # `probs /= probs.sum()` (no dim).  The sum comes from the kernel's per-tile
    # partial sums (valid rows / valid cols only); the exact divide stays in
    # f32 so sum(out) == 1 to tight tolerance.  NOTE: only [:B, :n_outputs] of
    # the padded slab is meaningful.
    total = jnp.sum(psums[:, 0, 0])
    probs = out_p[:B, :n_outputs].astype(jnp.float32)
    return probs / total


def init_params(key, n_inputs, n_outputs, n_hidden):
    # Deterministic synthetic init (PyTorch-style uniform fan-in bounds), f32.
    ks = jax.random.split(key, 6)

    def lin(kw, kb, fan_in, fan_out):
        bound = 1.0 / jnp.sqrt(fan_in)
        w = jax.random.uniform(kw, (fan_in, fan_out), jnp.float32, -bound, bound)
        b = jax.random.uniform(kb, (1, fan_out), jnp.float32, -bound, bound)
        return w, b

    w1, b1 = lin(ks[0], ks[1], n_inputs, n_hidden)
    w2, b2 = lin(ks[2], ks[3], n_hidden, n_hidden)
    w3, b3 = lin(ks[4], ks[5], n_hidden, n_outputs)
    return (w1, b1, w2, b2, w3, b3)


if __name__ == "__main__":
    key = jax.random.PRNGKey(0)
    kx, kp = jax.random.split(key)

    # Small shapes consistent with the module (toy DQN).  Real gains require
    # large B; the wrapper handles that automatically via the batch grid.
    B, n_inputs, n_outputs, n_hidden = 2, 4, 2, 32
    x = jax.random.normal(kx, (B, n_inputs), jnp.float32)
    params = init_params(kp, n_inputs, n_outputs, n_hidden)

    # Pad/cast weights once, outside the jitted forward.
    prepared, n_out = prepare_params(params)

    fwd = jax.jit(functools.partial(dqn_forward, n_outputs=n_out))
    out = fwd(x, prepared)
    jax.block_until_ready(out)

    # sanity: shape, finiteness, and global normalization to 1
    assert out.shape == (B, n_outputs)
    assert bool(jnp.all(jnp.isfinite(out)))
    assert abs(float(jnp.sum(out)) - 1.0) < 1e-5
    print("KERNEL_OK")
</pallas_src>

<mosaic_0001>
module attributes {stable_mosaic.version = 11 : i64} {
  func.func @dqn_kernel(%arg0: i32, %arg1: memref<16x4xbf16, #tpu.memory_space<vmem>>, %arg2: memref<4x128xbf16, #tpu.memory_space<vmem>>, %arg3: memref<1x128xf32, #tpu.memory_space<vmem>>, %arg4: memref<128x128xbf16, #tpu.memory_space<vmem>>, %arg5: memref<1x128xf32, #tpu.memory_space<vmem>>, %arg6: memref<128x128xbf16, #tpu.memory_space<vmem>>, %arg7: memref<1x128xf32, #tpu.memory_space<vmem>>, %arg8: memref<1x128xf32, #tpu.memory_space<vmem>>, %arg9: memref<16x128xbf16, #tpu.memory_space<vmem>>, %arg10: memref<1x8x128xf32, #tpu.memory_space<vmem>>) attributes {dimension_semantics = [#tpu.dimension_semantics<parallel>], iteration_bounds = array<i64: 1>, scalar_prefetch = 0 : i64, scratch_operands = 0 : i64, tpu.core_type = #tpu.core_type<tc>, window_params = [{transform_indices = @transform_0, window_bounds = array<i64: 16, 4>}, {pipeline_mode = #tpu.pipeline_mode<synchronous>, transform_indices = @transform_1, window_bounds = array<i64: 4, 128>}, {pipeline_mode = #tpu.pipeline_mode<synchronous>, transform_indices = @transform_2, window_bounds = array<i64: 1, 128>}, {pipeline_mode = #tpu.pipeline_mode<synchronous>, transform_indices = @transform_3, window_bounds = array<i64: 128, 128>}, {pipeline_mode = #tpu.pipeline_mode<synchronous>, transform_indices = @transform_4, window_bounds = array<i64: 1, 128>}, {pipeline_mode = #tpu.pipeline_mode<synchronous>, transform_indices = @transform_5, window_bounds = array<i64: 128, 128>}, {pipeline_mode = #tpu.pipeline_mode<synchronous>, transform_indices = @transform_6, window_bounds = array<i64: 1, 128>}, {pipeline_mode = #tpu.pipeline_mode<synchronous>, transform_indices = @transform_7, window_bounds = array<i64: 1, 128>}, {transform_indices = @transform_8, window_bounds = array<i64: 16, 128>}, {transform_indices = @transform_9, window_bounds = array<i64: 1, 8, 128>}]} {
    %c0 = arith.constant 0 : index
    %c0_0 = arith.constant 0 : index
    %0 = vector.load %arg1[%c0, %c0_0] : memref<16x4xbf16, #tpu.memory_space<vmem>>, vector<16x4xbf16>
    %c0_1 = arith.constant 0 : index
    %c0_2 = arith.constant 0 : index
    %1 = vector.load %arg2[%c0_1, %c0_2] : memref<4x128xbf16, #tpu.memory_space<vmem>>, vector<4x128xbf16>
    %cst = arith.constant dense<0.000000e+00> : vector<16x128xf32>
    %2 = tpu.matmul %0, %1, %cst {dimension_numbers = #tpu.dot_dimension_numbers<[1], [0], [0], [1], [0, 0, 1, 1], [], []>} : vector<16x4xbf16>, vector<4x128xbf16>, vector<16x128xf32> -> vector<16x128xf32>
    %c0_3 = arith.constant 0 : index
    %c0_4 = arith.constant 0 : index
    %3 = vector.load %arg3[%c0_3, %c0_4] : memref<1x128xf32, #tpu.memory_space<vmem>>, vector<1x128xf32>
    %4 = vector.broadcast %3 : vector<1x128xf32> to vector<16x128xf32>
    %5 = arith.addf %2, %4 : vector<16x128xf32>
    %cst_5 = arith.constant 0.000000e+00 : f32
    %6 = vector.broadcast %cst_5 : f32 to vector<16x128xf32>
    %7 = arith.maximumf %5, %6 : vector<16x128xf32>
    %8 = arith.truncf %7 : vector<16x128xf32> to vector<16x128xbf16>
    %c0_6 = arith.constant 0 : index
    %c0_7 = arith.constant 0 : index
    %9 = vector.load %arg4[%c0_6, %c0_7] : memref<128x128xbf16, #tpu.memory_space<vmem>>, vector<128x128xbf16>
    %cst_8 = arith.constant dense<0.000000e+00> : vector<16x128xf32>
    %10 = tpu.matmul %8, %9, %cst_8 {dimension_numbers = #tpu.dot_dimension_numbers<[1], [0], [0], [1], [0, 0, 1, 1], [], []>} : vector<16x128xbf16>, vector<128x128xbf16>, vector<16x128xf32> -> vector<16x128xf32>
    %c0_9 = arith.constant 0 : index
    %c0_10 = arith.constant 0 : index
    %11 = vector.load %arg5[%c0_9, %c0_10] : memref<1x128xf32, #tpu.memory_space<vmem>>, vector<1x128xf32>
    %12 = vector.broadcast %11 : vector<1x128xf32> to vector<16x128xf32>
    %13 = arith.addf %10, %12 : vector<16x128xf32>
    %cst_11 = arith.constant 0.000000e+00 : f32
    %14 = vector.broadcast %cst_11 : f32 to vector<16x128xf32>
    %15 = arith.maximumf %13, %14 : vector<16x128xf32>
    %16 = arith.truncf %15 : vector<16x128xf32> to vector<16x128xbf16>
    %c0_12 = arith.constant 0 : index
    %c0_13 = arith.constant 0 : index
    %17 = vector.load %arg6[%c0_12, %c0_13] : memref<128x128xbf16, #tpu.memory_space<vmem>>, vector<128x128xbf16>
    %cst_14 = arith.constant dense<0.000000e+00> : vector<16x128xf32>
    %18 = tpu.matmul %16, %17, %cst_14 {dimension_numbers = #tpu.dot_dimension_numbers<[1], [0], [0], [1], [0, 0, 1, 1], [], []>} : vector<16x128xbf16>, vector<128x128xbf16>, vector<16x128xf32> -> vector<16x128xf32>
    %c0_15 = arith.constant 0 : index
    %c0_16 = arith.constant 0 : index
    %19 = vector.load %arg7[%c0_15, %c0_16] : memref<1x128xf32, #tpu.memory_space<vmem>>, vector<1x128xf32>
    %20 = vector.broadcast %19 : vector<1x128xf32> to vector<16x128xf32>
    %21 = arith.addf %18, %20 : vector<16x128xf32>
    %cst_17 = arith.constant dense<0xFF800000> : vector<16xf32>
    %22 = vector.multi_reduction <maximumf>, %21, %cst_17 [1] : vector<16x128xf32> to vector<16xf32>
    %23 = vector.shape_cast %22 : vector<16xf32> to vector<16x1xf32>
    %24 = vector.broadcast %23 : vector<16x1xf32> to vector<16x128xf32>
    %25 = arith.subf %21, %24 : vector<16x128xf32>
    %26 = math.exp %25 : vector<16x128xf32>
    %cst_18 = arith.constant dense<0.000000e+00> : vector<16xf32>
    %27 = vector.multi_reduction <add>, %26, %cst_18 [1] : vector<16x128xf32> to vector<16xf32>
    %28 = vector.shape_cast %27 : vector<16xf32> to vector<16x1xf32>
    %29 = tpu.reciprocal %28 {approx = true} : vector<16x1xf32> -> vector<16x1xf32>
    %30 = vector.broadcast %29 : vector<16x1xf32> to vector<16x128xf32>
    %31 = arith.mulf %26, %30 : vector<16x128xf32>
    %c0_19 = arith.constant 0 : index
    %c0_20 = arith.constant 0 : index
    %32 = vector.load %arg8[%c0_19, %c0_20] : memref<1x128xf32, #tpu.memory_space<vmem>>, vector<1x128xf32>
    %33 = vector.broadcast %32 : vector<1x128xf32> to vector<16x128xf32>
    %34 = arith.maximumf %31, %33 : vector<16x128xf32>
    %cst_21 = arith.constant 1.000000e+00 : f32
    %35 = vector.broadcast %cst_21 : f32 to vector<16x128xf32>
    %36 = arith.minimumf %34, %35 : vector<16x128xf32>
    %37 = arith.truncf %36 : vector<16x128xf32> to vector<16x128xbf16>
    %c0_22 = arith.constant 0 : index
    %c0_23 = arith.constant 0 : index
    %38 = vector.load %arg9[%c0_22, %c0_23] : memref<16x128xbf16, #tpu.memory_space<vmem>>, vector<16x128xbf16>
    tpu.vector_store %arg9[%c0_22, %c0_23], %37 {strides = array<i32>} : memref<16x128xbf16, #tpu.memory_space<vmem>>, vector<16x128xbf16>,
    %39 = tpu.iota {dimensions = array<i32: 0>} : vector<16x128xi32>
    %c16_i32 = arith.constant 16 : i32
    %40 = arith.muli %arg0, %c16_i32 : i32
    %41 = vector.broadcast %40 : i32 to vector<16x128xi32>
    %42 = arith.addi %39, %41 : vector<16x128xi32>
    %c2_i32 = arith.constant 2 : i32
    %43 = vector.broadcast %c2_i32 : i32 to vector<16x128xi32>
    %44 = arith.cmpi slt, %42, %43 : vector<16x128xi32>
    %45 = arith.extf %37 : vector<16x128xbf16> to vector<16x128xf32>
    %cst_24 = arith.constant 0.000000e+00 : f32
    %46 = vector.broadcast %cst_24 : f32 to vector<16x128xf32>
    %47 = arith.select %44, %45, %46 : vector<16x128xi1>, vector<16x128xf32>
    %48 = vector.shape_cast %47 : vector<16x128xf32> to vector<1x16x128xf32>
    %cst_25 = arith.constant dense<0.000000e+00> : vector<1xf32>
    %49 = vector.multi_reduction <add>, %48, %cst_25 [1, 2] : vector<1x16x128xf32> to vector<1xf32>
    %50 = vector.shape_cast %49 : vector<1xf32> to vector<1x1x1xf32>
    %51 = vector.extract %50[0, 0, 0] : f32 from vector<1x1x1xf32>
    %52 = vector.broadcast %51 : f32 to vector<1x8x128xf32>
    %c0_26 = arith.constant 0 : index
    %c0_27 = arith.constant 0 : index
    %c0_28 = arith.constant 0 : index
    %53 = vector.load %arg10[%c0_26, %c0_27, %c0_28] : memref<1x8x128xf32, #tpu.memory_space<vmem>>, vector<1x8x128xf32>
    tpu.vector_store %arg10[%c0_26, %c0_27, %c0_28], %52 {strides = array<i32>} : memref<1x8x128xf32, #tpu.memory_space<vmem>>, vector<1x8x128xf32>,
    return
  }
  func.func @transform_0(%arg0: i32) -> (i32, i32) {
    %c0_i32 = arith.constant 0 : i32
    %c0_i32_0 = arith.constant 0 : i32
    return %arg0, %c0_i32 : i32, i32
  }
  func.func @transform_1(%arg0: i32) -> (i32, i32) {
    %c0_i32 = arith.constant 0 : i32
    %c0_i32_0 = arith.constant 0 : i32
    %c0_i32_1 = arith.constant 0 : i32
    return %c0_i32, %c0_i32_0 : i32, i32
  }
  func.func @transform_2(%arg0: i32) -> (i32, i32) {
    %c0_i32 = arith.constant 0 : i32
    %c0_i32_0 = arith.constant 0 : i32
    %c0_i32_1 = arith.constant 0 : i32
    return %c0_i32, %c0_i32_0 : i32, i32
  }
  func.func @transform_3(%arg0: i32) -> (i32, i32) {
    %c0_i32 = arith.constant 0 : i32
    %c0_i32_0 = arith.constant 0 : i32
    %c0_i32_1 = arith.constant 0 : i32
    return %c0_i32, %c0_i32_0 : i32, i32
  }
  func.func @transform_4(%arg0: i32) -> (i32, i32) {
    %c0_i32 = arith.constant 0 : i32
    %c0_i32_0 = arith.constant 0 : i32
    %c0_i32_1 = arith.constant 0 : i32
    return %c0_i32, %c0_i32_0 : i32, i32
  }
  func.func @transform_5(%arg0: i32) -> (i32, i32) {
    %c0_i32 = arith.constant 0 : i32
    %c0_i32_0 = arith.constant 0 : i32
    %c0_i32_1 = arith.constant 0 : i32
    return %c0_i32, %c0_i32_0 : i32, i32
  }
  func.func @transform_6(%arg0: i32) -> (i32, i32) {
    %c0_i32 = arith.constant 0 : i32
    %c0_i32_0 = arith.constant 0 : i32
    %c0_i32_1 = arith.constant 0 : i32
    return %c0_i32, %c0_i32_0 : i32, i32
  }
  func.func @transform_7(%arg0: i32) -> (i32, i32) {
    %c0_i32 = arith.constant 0 : i32
    %c0_i32_0 = arith.constant 0 : i32
    %c0_i32_1 = arith.constant 0 : i32
    return %c0_i32, %c0_i32_0 : i32, i32
  }
  func.func @transform_8(%arg0: i32) -> (i32, i32) {
    %c0_i32 = arith.constant 0 : i32
    %c0_i32_0 = arith.constant 0 : i32
    return %arg0, %c0_i32 : i32, i32
  }
  func.func @transform_9(%arg0: i32) -> (i32, i32, i32) {
    %c0_i32 = arith.constant 0 : i32
    %c0_i32_0 = arith.constant 0 : i32
    %c0_i32_1 = arith.constant 0 : i32
    return %arg0, %c0_i32, %c0_i32_0 : i32, i32, i32
  }
}

</mosaic_0001>

<llo_original>
// kernel: dqn_forward.1
$region0: #{dqn_forward.1}
  #allocation0 [shape = 'u32[]', space=smem, size = 0x4, offset = 0x4, fixed_abs, tag = 'smem constant byte address 0x4 - core index']
  #allocation1 [shape = 'u32[72,128]{1,0:T(1,128)}', space=vmem, size = 0x9000, scoped, tag = 'internal scratch']
  %s0 = inlined_call_operand.vmem [shape: bf16[16,4], index: 0, kind: input, shape index: {}]
  %s1 = inlined_call_operand.vmem [shape: bf16[4,128], index: 1, kind: input, shape index: {}]
  %s2 = inlined_call_operand.vmem [shape: f32[1,128], index: 2, kind: input, shape index: {}]
  %s3 = inlined_call_operand.hbm [shape: bf16[128,128], index: 3, kind: input, shape index: {}]
  %s4 = inlined_call_operand.vmem [shape: f32[1,128], index: 4, kind: input, shape index: {}]
  %s5 = inlined_call_operand.hbm [shape: bf16[128,128], index: 5, kind: input, shape index: {}]
  %s6 = inlined_call_operand.vmem [shape: f32[1,128], index: 6, kind: input, shape index: {}]
  %s7 = inlined_call_operand.vmem [shape: f32[1,128], index: 7, kind: input, shape index: {}]
  %s8 = inlined_call_operand.vmem [shape: bf16[16,128], index: 8, kind: output, shape index: {0}]
  %s9 = inlined_call_operand.vmem [shape: f32[1,8,128], index: 9, kind: output, shape index: {1}]
  %10 = xla_tuple %s8, %s9
  %s11 = sld [smem:[#allocation0]]
  $region58: #{dqn_forward.1} parent=0
    _
  %s13 = ssub.s32 1, %s11
  %s14 = scalar_select 0, %s13, %s11
  $region1: #{dqn_forward.1} parent=0
    #allocation2 [shape = 'u8[32768]{0}', space=vmem, size = 0x8000, scoped, tag = 'input window, operand 3, single buffered']
    #allocation3 [shape = 's32[1]{0}', space=sflag, size = 0x4, scoped, tag = 'scoped memory for dqn_forward.1']
    #allocation4 [shape = 'u8[32768]{0}', space=vmem, size = 0x8000, scoped, tag = 'input window, operand 5, single buffered']
    #allocation5 [shape = 's32[1]{0}', space=sflag, size = 0x4, scoped, tag = 'scoped memory for dqn_forward.1']
    %15 = vsyncpa [#allocation3], 0
    %16 = vsyncpa [#allocation5], 0
    // Predicated region
    $region2: #{dqn_forward.1} parent=1 // pred_check
      _
    $region3: #{dqn_forward.1} parent=1 // pred_check_branch
      %18 = sbr.rel (0) target = $region5
    $region4: #{dqn_forward.1} parent=1 // pred_region
      _
    $region5: #{dqn_forward.1} parent=1 // pred_fallthru
      _
    // Predicated region
    $region6: #{dqn_forward.1} parent=1 // pred_check
      _
    $region7: #{dqn_forward.1} parent=1 // pred_check_branch
      %20 = sbr.rel (0) target = $region9
    $region8: #{dqn_forward.1} parent=1 // pred_region
      _
    $region9: #{dqn_forward.1} parent=1 // pred_fallthru
      _
    // Predicated region
    $region10: #{dqn_forward.1} parent=1 // pred_check
      _
    $region11: #{dqn_forward.1} parent=1 // pred_check_branch
      %22 = sbr.rel (0) target = $region13
    $region12: #{dqn_forward.1} parent=1 // pred_region
      _
    $region13: #{dqn_forward.1} parent=1 // pred_fallthru
      _
    // Predicated region
    $region14: #{dqn_forward.1} parent=1 // pred_check
      _
    $region15: #{dqn_forward.1} parent=1 // pred_check_branch
      %24 = sbr.rel (0) target = $region17
    $region16: #{dqn_forward.1} parent=1 // pred_region
      %26 = vsyncadd [#allocation3], 0
      %s27 = sshll.u32 %s3, 4
      %s28 = int_to_ptr.hbm [resolvable:$true] %s27
      %s29 = sshll.u32 [#allocation2], 4
      %s30 = int_to_ptr.vmem [resolvable:$true] %s29
      %35 = dma.hbm_to_vmem [thread:$0]  %s28, 1024, %s30, [#allocation3], 64, 64, 4
    $region17: #{dqn_forward.1} parent=1 // pred_fallthru
      _
    // Predicated region
    $region18: #{dqn_forward.1} parent=1 // pred_check
      _
    $region19: #{dqn_forward.1} parent=1 // pred_check_branch
      %37 = sbr.rel (0) target = $region21
    $region20: #{dqn_forward.1} parent=1 // pred_region
      _
    $region21: #{dqn_forward.1} parent=1 // pred_fallthru
      _
    // Predicated region
    $region22: #{dqn_forward.1} parent=1 // pred_check
      _
    $region23: #{dqn_forward.1} parent=1 // pred_check_branch
      %39 = sbr.rel (0) target = $region25
    $region24: #{dqn_forward.1} parent=1 // pred_region
      %41 = vsyncadd [#allocation5], 0
      %s42 = sshll.u32 %s5, 4
      %s43 = int_to_ptr.hbm [resolvable:$true] %s42
      %s44 = sshll.u32 [#allocation4], 4
      %s45 = int_to_ptr.vmem [resolvable:$true] %s44
      %50 = dma.hbm_to_vmem [thread:$0]  %s43, 1024, %s45, [#allocation5], 64, 64, 4
    $region25: #{dqn_forward.1} parent=1 // pred_fallthru
      _
    // Predicated region
    $region26: #{dqn_forward.1} parent=1 // pred_check
      _
    $region27: #{dqn_forward.1} parent=1 // pred_check_branch
      %52 = sbr.rel (0) target = $region29
    $region28: #{dqn_forward.1} parent=1 // pred_region
      _
    $region29: #{dqn_forward.1} parent=1 // pred_fallthru
      _
    // Predicated region
    $region30: #{dqn_forward.1} parent=1 // pred_check
      _
    $region31: #{dqn_forward.1} parent=1 // pred_check_branch
      %54 = sbr.rel (0) target = $region33
    $region32: #{dqn_forward.1} parent=1 // pred_region
      _
    $region33: #{dqn_forward.1} parent=1 // pred_fallthru
      _
    // Predicated region
    $region34: #{dqn_forward.1} parent=1 // pred_check
      _
    $region35: #{dqn_forward.1} parent=1 // pred_check_branch
      %56 = sbr.rel (0) target = $region37
    $region36: #{dqn_forward.1} parent=1 // pred_region
      %58 = dma.done [#allocation3], 1024
    $region37: #{dqn_forward.1} parent=1 // pred_fallthru
      _
    // Predicated region
    $region38: #{dqn_forward.1} parent=1 // pred_check
      _
    $region39: #{dqn_forward.1} parent=1 // pred_check_branch
      %60 = sbr.rel (0) target = $region41
    $region40: #{dqn_forward.1} parent=1 // pred_region
      %62 = dma.done [#allocation5], 1024
    $region41: #{dqn_forward.1} parent=1 // pred_fallthru
      _
    %v64 = vld [vmem:[%s0] sm:$0xf]
    %v65 = vld [vmem:[%s0 + $0x4] sm:$0xf]
    %v66 = vld [vmem:[%s1] sm:$0x3]
    %v67 = vld [vmem:[%s2] sm:$0x1]
    %v69 = vperm.slane %v67, 0
    %v73 = vunpack.c.l.b16 %v64
    %v74 = vunpack.c.l.b16 %v65
    %v75 = vpack.c.b16 %v74, %v73
    %vm76 = vcmask 31744
    %v78 = vsel %vm76, %v75, 0
    %vm80 = vcmask 1041408
    %v82 = vsel %vm80, %v66, 0
    %84 = vmatpush.bf16.msra.mxu0 0
    %85 = vmatpush.bf16.msra.mxu0 0
    %86 = vmatpush.bf16.msra.mxu0 0
    %87 = vmatpush.bf16.msra.mxu0 0
    %88 = vmatpush.bf16.msra.mxu0 0
    %89 = vmatpush.bf16.msra.mxu0 0
    %90 = vmatpush.bf16.msra.mxu0 0
    %91 = vmatpush.bf16.msra.mxu0 %v82
    %92 = vmatmul.bf16.gmra.mxu0 %v78
    %v93 = vpop.f32.mrf.mxu0
    %v94 = vadd.f32 %v69, %v93
    %v95 = vpop.f32.mrf.mxu0
    %v96 = vadd.f32 %v69, %v95
    %97 = vdwg.mxu0
    %v98 = vmax.f32 %v94, 0.0
    %v99 = vmax.f32 %v96, 0.0
    %v100 = vpack.c.bf16 %v99, %v98
    %v101 = vld [vmem:[#allocation2] sm:$0xf]
    %v102 = vld [vmem:[#allocation2 + $0x4] sm:$0xf]
    %v103 = vld [vmem:[#allocation2 + $0x8] sm:$0xf]
    %v104 = vld [vmem:[#allocation2 + $0xc] sm:$0xf]
    %v105 = vld [vmem:[#allocation2 + $0x10] sm:$0xf]
    %v106 = vld [vmem:[#allocation2 + $0x14] sm:$0xf]
    %v107 = vld [vmem:[#allocation2 + $0x18] sm:$0xf]
    %v108 = vld [vmem:[#allocation2 + $0x1c] sm:$0xf]
    %v109 = vld [vmem:[#allocation2 + $0x20] sm:$0xf]
    %v110 = vld [vmem:[#allocation2 + $0x24] sm:$0xf]
    %v111 = vld [vmem:[#allocation2 + $0x28] sm:$0xf]
    %v112 = vld [vmem:[#allocation2 + $0x2c] sm:$0xf]
    %v113 = vld [vmem:[#allocation2 + $0x30] sm:$0xf]
    %v114 = vld [vmem:[#allocation2 + $0x34] sm:$0xf]
    %v115 = vld [vmem:[#allocation2 + $0x38] sm:$0xf]
    %v116 = vld [vmem:[#allocation2 + $0x3c] sm:$0xf]
    %v117 = vld [vmem:[%s4] sm:$0x1]
    %v119 = vperm.slane %v117, 0
    %v137 = vunpack.c.l.b16 %v101
    %v138 = vunpack.c.l.b16 %v102
    %v139 = vunpack.c.l.b16 %v103
    %v140 = vunpack.c.l.b16 %v104
    %v141 = vunpack.c.l.b16 %v105
    %v142 = vunpack.c.l.b16 %v106
    %v143 = vunpack.c.l.b16 %v107
    %v144 = vunpack.c.l.b16 %v108
    %v145 = vunpack.c.l.b16 %v109
    %v146 = vunpack.c.l.b16 %v110
    %v147 = vunpack.c.l.b16 %v111
    %v148 = vunpack.c.l.b16 %v112
    %v149 = vunpack.c.l.b16 %v113
    %v150 = vunpack.c.l.b16 %v114
    %v151 = vunpack.c.l.b16 %v115
    %v152 = vunpack.c.l.b16 %v116
    %v153 = vpack.c.b16 %v138, %v137
    %v154 = vpack.c.b16 %v140, %v139
    %v155 = vpack.c.b16 %v142, %v141
    %v156 = vpack.c.b16 %v144, %v143
    %v157 = vpack.c.b16 %v146, %v145
    %v158 = vpack.c.b16 %v148, %v147
    %v159 = vpack.c.b16 %v150, %v149
    %v160 = vpack.c.b16 %v152, %v151
    %169 = vmatpush.bf16.msra.mxu0 %v160
    %170 = vmatpush.bf16.msra.mxu0 %v159
    %171 = vmatpush.bf16.msra.mxu0 %v158
    %172 = vmatpush.bf16.msra.mxu0 %v157
    %173 = vmatpush.bf16.msra.mxu0 %v156
    %174 = vmatpush.bf16.msra.mxu0 %v155
    %175 = vmatpush.bf16.msra.mxu0 %v154
    %176 = vmatpush.bf16.msra.mxu0 %v153
    %177 = vmatmul.bf16.gmra.mxu0 %v100
    %v178 = vpop.f32.mrf.mxu0
    %v179 = vadd.f32 %v119, %v178
    %v180 = vpop.f32.mrf.mxu0
    %v181 = vadd.f32 %v119, %v180
    %182 = vdwg.mxu0
    %v183 = vmax.f32 %v179, 0.0
    %v184 = vmax.f32 %v181, 0.0
    %v185 = vpack.c.bf16 %v184, %v183
    %v186 = vld [vmem:[#allocation4] sm:$0xf]
    %v187 = vld [vmem:[#allocation4 + $0x4] sm:$0xf]
    %v188 = vld [vmem:[#allocation4 + $0x8] sm:$0xf]
    %v189 = vld [vmem:[#allocation4 + $0xc] sm:$0xf]
    %v190 = vld [vmem:[#allocation4 + $0x10] sm:$0xf]
    %v191 = vld [vmem:[#allocation4 + $0x14] sm:$0xf]
    %v192 = vld [vmem:[#allocation4 + $0x18] sm:$0xf]
    %v193 = vld [vmem:[#allocation4 + $0x1c] sm:$0xf]
    %v194 = vld [vmem:[#allocation4 + $0x20] sm:$0xf]
    %v195 = vld [vmem:[#allocation4 + $0x24] sm:$0xf]
    %v196 = vld [vmem:[#allocation4 + $0x28] sm:$0xf]
    %v197 = vld [vmem:[#allocation4 + $0x2c] sm:$0xf]
    %v198 = vld [vmem:[#allocation4 + $0x30] sm:$0xf]
    %v199 = vld [vmem:[#allocation4 + $0x34] sm:$0xf]
    %v200 = vld [vmem:[#allocation4 + $0x38] sm:$0xf]
    %v201 = vld [vmem:[#allocation4 + $0x3c] sm:$0xf]
    %v202 = vld [vmem:[%s6] sm:$0x1]
    %v204 = vperm.slane %v202, 0
    %v222 = vunpack.c.l.b16 %v186
    %v223 = vunpack.c.l.b16 %v187
    %v224 = vunpack.c.l.b16 %v188
    %v225 = vunpack.c.l.b16 %v189
    %v226 = vunpack.c.l.b16 %v190
    %v227 = vunpack.c.l.b16 %v191
    %v228 = vunpack.c.l.b16 %v192
    %v229 = vunpack.c.l.b16 %v193
    %v230 = vunpack.c.l.b16 %v194
    %v231 = vunpack.c.l.b16 %v195
    %v232 = vunpack.c.l.b16 %v196
    %v233 = vunpack.c.l.b16 %v197
    %v234 = vunpack.c.l.b16 %v198
    %v235 = vunpack.c.l.b16 %v199
    %v236 = vunpack.c.l.b16 %v200
    %v237 = vunpack.c.l.b16 %v201
    %v238 = vpack.c.b16 %v223, %v222
    %v239 = vpack.c.b16 %v225, %v224
    %v240 = vpack.c.b16 %v227, %v226
    %v241 = vpack.c.b16 %v229, %v228
    %v242 = vpack.c.b16 %v231, %v230
    %v243 = vpack.c.b16 %v233, %v232
    %v244 = vpack.c.b16 %v235, %v234
    %v245 = vpack.c.b16 %v237, %v236
    %254 = vmatpush.bf16.msra.mxu0 %v245
    %255 = vmatpush.bf16.msra.mxu0 %v244
    %256 = vmatpush.bf16.msra.mxu0 %v243
    %257 = vmatpush.bf16.msra.mxu0 %v242
    %258 = vmatpush.bf16.msra.mxu0 %v241
    %259 = vmatpush.bf16.msra.mxu0 %v240
    %260 = vmatpush.bf16.msra.mxu0 %v239
    %261 = vmatpush.bf16.msra.mxu0 %v238
    %262 = vmatmul.bf16.gmra.mxu0 %v185
    %v263 = vpop.f32.mrf.mxu0
    %v264 = vadd.f32 %v204, %v263
    %v265 = vpop.f32.mrf.mxu0
    %v266 = vadd.f32 %v204, %v265
    %267 = vdwg.mxu0
    %268 = vmax.xlane.f32.xlu0 %v264
    %v269 = vpop.xlane.xlu0 %268
    %270 = vmax.xlane.f32.xlu0 %v266
    %v271 = vpop.xlane.xlu0 %270
    %v272 = vsub.f32 %v264, %v269
    %v273 = vsub.f32 %v266, %v271
    %v274 = vmul.f32 %v272, 1.442695
    %v275 = vpow.pop %v274
    %v276 = vmul.f32 %v273, 1.442695
    %v277 = vpow.pop %v276
    %278 = vadd.xlane.f32.xlu0 %v275
    %v279 = vpop.xlane.xlu0 %278
    %280 = vadd.xlane.f32.xlu0 %v277
    %v281 = vpop.xlane.xlu0 %280
    %v282 = vrcp.pop %v279
    %v283 = vrcp.pop %v281
    %v284 = vmul.f32 %v275, %v282
    %v285 = vmul.f32 %v277, %v283
    %v286 = vld [vmem:[%s7] sm:$0x1]
    %v288 = vperm.slane %v286, 0
    %v290 = vmax.f32 %v284, %v288
    %v291 = vmax.f32 %v285, %v288
    %v292 = vmin.f32 %v290, 1.0
    %v293 = vmin.f32 %v291, 1.0
    %v294 = vpack.c.bf16 %v292, %v292
    %v295 = vpack.c.bf16 %v293, %v293
    %296 = vst [vmem:[%s8] sm:$0xf] %v294
    %297 = vst [vmem:[%s8 + $0x4] sm:$0xf] %v295
    %v298 = vlaneseq
    %v299 = vshrl.u32 %v298, 7
    %v300 = vadd.s32 %v299, 8
    %s301 = smul.u32 0, 16
    %v302 = vstv %s301
    %v303 = vadd.s32 %v299, %v302
    %v304 = vadd.s32 %v300, %v302
    %vm305 = vcmp.lt.s32.totalorder %v303, 2
    %vm306 = vcmp.lt.s32.totalorder %v304, 2
    %v307 = vunpack.c.l.bf16 %v294
    %v308 = vunpack.c.l.bf16 %v295
    %v309 = vsel %vm305, %v307, 0.0
    %v310 = vsel %vm306, %v308, 0.0
    %v311 = vadd.f32 %v309, %v310
    %312 = vadd.xlane.f32.xlu0 %v311
    %v313 = vpop.xlane.xlu0 %312
    %v314 = vrot.slane %v313, 4
    %v315 = vadd.f32 %v313, %v314
    %v316 = vrot.slane %v315, 2
    %v317 = vadd.f32 %v315, %v316
    %v318 = vrot.slane %v317, 1
    %v319 = vadd.f32 %v317, %v318
    %s320 = vtos %v319
    %v321 = vstv %s320
    %322 = vst [vmem:[%s9] sm:$0xff] %v321
    // Predicated region
    $region42: #{dqn_forward.1} parent=1 // pred_check
      _
    $region43: #{dqn_forward.1} parent=1 // pred_check_branch
      %324 = sbr.rel (0) target = $region45
    $region44: #{dqn_forward.1} parent=1 // pred_region
      _
    $region45: #{dqn_forward.1} parent=1 // pred_fallthru
      _
    // Predicated region
    $region46: #{dqn_forward.1} parent=1 // pred_check
      _
    $region47: #{dqn_forward.1} parent=1 // pred_check_branch
      %326 = sbr.rel (0) target = $region49
    $region48: #{dqn_forward.1} parent=1 // pred_region
      _
    $region49: #{dqn_forward.1} parent=1 // pred_fallthru
      _
    // Predicated region
    $region50: #{dqn_forward.1} parent=1 // pred_check
      _
    $region51: #{dqn_forward.1} parent=1 // pred_check_branch
      %328 = sbr.rel (0) target = $region53
    $region52: #{dqn_forward.1} parent=1 // pred_region
      _
    $region53: #{dqn_forward.1} parent=1 // pred_fallthru
      _
    // Predicated region
    $region54: #{dqn_forward.1} parent=1 // pred_check
      _
    $region55: #{dqn_forward.1} parent=1 // pred_check_branch
      %330 = sbr.rel (0) target = $region57
    $region56: #{dqn_forward.1} parent=1 // pred_region
      _
    $region57: #{dqn_forward.1} parent=1 // pred_fallthru
      _
    %331 = vsyncpa [#allocation3], 1
    %332 = vsyncpa [#allocation5], 1

</llo_original>
